<compile_context>
chip_gen: v5e
topology: v5e:2x2
jax: 0.10.0
libtpu: 0.0.40
codegen_flags: <defaults>
</compile_context>

<pallas_src>
import functools

import jax
import jax.numpy as jnp
from jax.experimental import pallas as pl
from jax.experimental.pallas import tpu as pltpu


def _ce_partial_sum_kernel(logits_ref, labels_ref, out_ref, *,
                           n_total, block_n, blocks_per_slice):
    """Accumulate the sum of per-row softmax cross-entropy NLL for one slice.

    grid = (P, blocks_per_slice):
      axis 0 ("parallel")  : independent split of the row tiles (v7x: 2 TCs)
      axis 1 ("arbitrary") : reduction over the row tiles of this slice
    out_ref is the slice's (1, 1) f32 partial-sum block, resident across axis 1.
    """
    p = pl.program_id(0)
    i = pl.program_id(1)

    @pl.when(i == 0)
    def _init():
        out_ref[...] = jnp.zeros_like(out_ref)

    logits = logits_ref[...].astype(jnp.float32)      # (block_n, C)
    labels = labels_ref[...]                          # (block_n, 1) int32
    bn, c = logits.shape

    # Numerically stable logsumexp; reuse the shifted logits for the label
    # gather as well (the per-row max cancels in lse - picked).
    m = jnp.max(logits, axis=-1, keepdims=True)                       # (bn, 1)
    shifted = logits - m                                              # (bn, C)
    lse = jnp.log(jnp.sum(jnp.exp(shifted), axis=-1, keepdims=True))  # (bn, 1)

    col = jax.lax.broadcasted_iota(jnp.int32, (bn, c), 1)
    picked = jnp.sum(jnp.where(col == labels, shifted, 0.0),
                     axis=-1, keepdims=True)                          # (bn, 1)

    per_row = lse - picked                                            # (bn, 1)

    # Mask out padded remainder rows of the final tile (global row >= N).
    blk = p * blocks_per_slice + i
    row = blk * block_n + jax.lax.broadcasted_iota(jnp.int32, (bn, 1), 0)
    per_row = jnp.where(row < n_total, per_row, 0.0)

    out_ref[...] += jnp.sum(per_row, axis=0, keepdims=True)


def _choose_block_n(n, c):
    """Row-tile size: one logits buffer ~<= 4 MiB so the double-buffered pair
    stays far below the 32 MiB default scoped VMEM on all generations
    (including v7x with its smaller 64 MiB physical VMEM)."""
    if n <= 8:
        return n                                     # block == full array (always legal)
    rows = (4 * 1024 * 1024) // max(4 * c, 1)
    rows = max(8, min(rows, 2048, n))
    return (rows // 8) * 8                           # keep sublane multiple of 8


def cross_entropy_mean(logits, labels):
    """torch.nn.CrossEntropyLoss(reduction='mean') for (N, C) logits, (N,) labels."""
    n, c = logits.shape
    labels2d = labels.astype(jnp.int32).reshape(n, 1)

    block_n = _choose_block_n(n, c)
    nb = pl.cdiv(n, block_n)

    # Leading independent axis: lets the two TensorCores of a v7x chip each take
    # half of the row tiles. On 1-TC chips it is just a (cheap) serial loop.
    p = 2 if (nb % 2 == 0 and nb >= 2) else 1
    blocks_per_slice = nb // p

    kernel = functools.partial(
        _ce_partial_sum_kernel,
        n_total=n, block_n=block_n, blocks_per_slice=blocks_per_slice)

    partials = pl.pallas_call(
        kernel,
        out_shape=jax.ShapeDtypeStruct((p, 1, 1), jnp.float32),
        grid=(p, blocks_per_slice),
        in_specs=[
            pl.BlockSpec((block_n, c),
                         lambda pi, i: (pi * blocks_per_slice + i, 0)),
            pl.BlockSpec((block_n, 1),
                         lambda pi, i: (pi * blocks_per_slice + i, 0)),
        ],
        # Leading dim squeezed -> kernel sees a (1, 1) accumulator block that is
        # resident across the "arbitrary" axis and written back once per slice.
        out_specs=pl.BlockSpec((None, 1, 1), lambda pi, i: (pi, 0, 0)),
        compiler_params=pltpu.CompilerParams(
            dimension_semantics=("parallel", "arbitrary")),
    )(logits, labels2d)

    # Combine per-slice partial sums and apply the 'mean' 1/N scale.
    return jnp.sum(partials) * (1.0 / n)


class SentimLossEnsemble:
    """Pallas port of sentim_loss_ensemble (CrossEntropyLoss, reduction='mean')."""

    def __init__(self, args=None):
        del args  # the PyTorch module ignores args too

    def __call__(self, logits, labels):
        return cross_entropy_mean(logits, labels)


def _ce_mean_ref(logits, labels):
    """Pure-JAX reference for validation."""
    logp = jax.nn.log_softmax(logits.astype(jnp.float32), axis=-1)
    picked = jnp.take_along_axis(logp, labels[:, None].astype(jnp.int32), axis=-1)
    return -jnp.mean(picked)


if __name__ == "__main__":
    key = jax.random.PRNGKey(0)
    loss_fn = SentimLossEnsemble(args=None)

    # Primary small case consistent with a sentiment head: batch=8, classes=16.
    k1, k2 = jax.random.split(key)
    logits = jax.random.normal(k1, (8, 16), dtype=jnp.float32)
    labels = jax.random.randint(k2, (8,), 0, 16, dtype=jnp.int32)
    loss = loss_fn(logits, labels)
    jax.block_until_ready(loss)
    ref = _ce_mean_ref(logits, labels)
    assert jnp.allclose(loss, ref, atol=1e-5, rtol=1e-4), (loss, ref)

    # Extra cases exercising remainder masking, the tiny-batch path, the
    # 2-way parallel split, and multi-step accumulation over row tiles.
    for (n, c) in [(37, 16), (6, 5), (260, 200), (8000, 16)]:
        k1, k2, key = jax.random.split(key, 3)
        lg = jax.random.normal(k1, (n, c), dtype=jnp.float32)
        lb = jax.random.randint(k2, (n,), 0, c, dtype=jnp.int32)
        got = loss_fn(lg, lb)
        jax.block_until_ready(got)
        want = _ce_mean_ref(lg, lb)
        assert jnp.allclose(got, want, atol=1e-5, rtol=1e-4), (n, c, got, want)

    print("KERNEL_OK")
</pallas_src>

<mosaic_0001>
module attributes {stable_mosaic.version = 11 : i64} {
  func.func @_ce_partial_sum_kernel(%arg0: i32, %arg1: i32, %arg2: memref<8x16xf32, #tpu.memory_space<vmem>>, %arg3: memref<8x1xi32, #tpu.memory_space<vmem>>, %arg4: memref<1x1x1xf32, #tpu.memory_space<vmem>>) attributes {dimension_semantics = [#tpu.dimension_semantics<parallel>, #tpu.dimension_semantics<arbitrary>], iteration_bounds = array<i64: 1, 1>, scalar_prefetch = 0 : i64, scratch_operands = 0 : i64, tpu.core_type = #tpu.core_type<tc>, window_params = [{transform_indices = @transform_0, window_bounds = array<i64: 8, 16>}, {transform_indices = @transform_1, window_bounds = array<i64: 8, 1>}, {transform_indices = @transform_2, window_bounds = array<i64: 1, 1, 1>}]} {
    %c0_i32 = arith.constant 0 : i32
    %0 = arith.cmpi eq, %arg1, %c0_i32 : i32
    %1 = arith.extui %0 : i1 to i32
    %c0_i32_0 = arith.constant 0 : i32
    %2 = arith.cmpi ne, %1, %c0_i32_0 : i32
    scf.if %2 {
      %cst_16 = arith.constant 0.000000e+00 : f32
      %39 = vector.broadcast %cst_16 : f32 to vector<1x1xf32>
      %c0_17 = arith.constant 0 : index
      %c0_18 = arith.constant 0 : index
      %c0_19 = arith.constant 0 : index
      %40 = vector.load %arg4[%c0_17, %c0_18, %c0_19] : memref<1x1x1xf32, #tpu.memory_space<vmem>>, vector<1x1x1xf32>
      %41 = vector.shape_cast %40 : vector<1x1x1xf32> to vector<1x1xf32>
      %42 = vector.shape_cast %39 : vector<1x1xf32> to vector<1x1x1xf32>
      tpu.vector_store %arg4[%c0_17, %c0_18, %c0_19], %42 {strides = array<i32>} : memref<1x1x1xf32, #tpu.memory_space<vmem>>, vector<1x1x1xf32>,
    } else {
    }
    %c0 = arith.constant 0 : index
    %c0_1 = arith.constant 0 : index
    %3 = vector.load %arg2[%c0, %c0_1] : memref<8x16xf32, #tpu.memory_space<vmem>>, vector<8x16xf32>
    %c0_2 = arith.constant 0 : index
    %c0_3 = arith.constant 0 : index
    %4 = vector.load %arg3[%c0_2, %c0_3] : memref<8x1xi32, #tpu.memory_space<vmem>>, vector<8x1xi32>
    %cst = arith.constant dense<0xFF800000> : vector<8xf32>
    %5 = vector.multi_reduction <maximumf>, %3, %cst [1] : vector<8x16xf32> to vector<8xf32>
    %6 = vector.shape_cast %5 : vector<8xf32> to vector<8x1xf32>
    %7 = vector.broadcast %6 : vector<8x1xf32> to vector<8x16xf32>
    %8 = arith.subf %3, %7 : vector<8x16xf32>
    %9 = math.exp %8 : vector<8x16xf32>
    %cst_4 = arith.constant dense<0.000000e+00> : vector<8xf32>
    %10 = vector.multi_reduction <add>, %9, %cst_4 [1] : vector<8x16xf32> to vector<8xf32>
    %11 = vector.shape_cast %10 : vector<8xf32> to vector<8x1xf32>
    %12 = math.log %11 : vector<8x1xf32>
    %13 = tpu.iota {dimensions = array<i32: 1>} : vector<8x16xi32>
    %14 = vector.broadcast %4 : vector<8x1xi32> to vector<8x16xi32>
    %15 = arith.cmpi eq, %13, %14 : vector<8x16xi32>
    %cst_5 = arith.constant 0.000000e+00 : f32
    %16 = vector.broadcast %cst_5 : f32 to vector<8x16xf32>
    %17 = arith.select %15, %8, %16 : vector<8x16xi1>, vector<8x16xf32>
    %cst_6 = arith.constant dense<0.000000e+00> : vector<8xf32>
    %18 = vector.multi_reduction <add>, %17, %cst_6 [1] : vector<8x16xf32> to vector<8xf32>
    %19 = vector.shape_cast %18 : vector<8xf32> to vector<8x1xf32>
    %20 = arith.subf %12, %19 : vector<8x1xf32>
    %c1_i32 = arith.constant 1 : i32
    %21 = arith.muli %arg0, %c1_i32 : i32
    %22 = arith.addi %21, %arg1 : i32
    %c8_i32 = arith.constant 8 : i32
    %23 = arith.muli %22, %c8_i32 : i32
    %24 = tpu.iota {dimensions = array<i32: 0>} : vector<8x1xi32>
    %25 = vector.broadcast %23 : i32 to vector<8x1xi32>
    %26 = arith.addi %25, %24 : vector<8x1xi32>
    %c8_i32_7 = arith.constant 8 : i32
    %27 = vector.broadcast %c8_i32_7 : i32 to vector<8x1xi32>
    %28 = arith.cmpi slt, %26, %27 : vector<8x1xi32>
    %cst_8 = arith.constant 0.000000e+00 : f32
    %29 = vector.broadcast %cst_8 : f32 to vector<8x1xf32>
    %30 = arith.select %28, %20, %29 : vector<8x1xi1>, vector<8x1xf32>
    %c0_9 = arith.constant 0 : index
    %c0_10 = arith.constant 0 : index
    %c0_11 = arith.constant 0 : index
    %31 = vector.load %arg4[%c0_9, %c0_10, %c0_11] : memref<1x1x1xf32, #tpu.memory_space<vmem>>, vector<1x1x1xf32>
    %32 = vector.shape_cast %31 : vector<1x1x1xf32> to vector<1x1xf32>
    %cst_12 = arith.constant dense<0.000000e+00> : vector<1xf32>
    %33 = vector.multi_reduction <add>, %30, %cst_12 [0] : vector<8x1xf32> to vector<1xf32>
    %34 = vector.shape_cast %33 : vector<1xf32> to vector<1x1xf32>
    %35 = arith.addf %32, %34 : vector<1x1xf32>
    %c0_13 = arith.constant 0 : index
    %c0_14 = arith.constant 0 : index
    %c0_15 = arith.constant 0 : index
    %36 = vector.load %arg4[%c0_13, %c0_14, %c0_15] : memref<1x1x1xf32, #tpu.memory_space<vmem>>, vector<1x1x1xf32>
    %37 = vector.shape_cast %36 : vector<1x1x1xf32> to vector<1x1xf32>
    %38 = vector.shape_cast %35 : vector<1x1xf32> to vector<1x1x1xf32>
    tpu.vector_store %arg4[%c0_13, %c0_14, %c0_15], %38 {strides = array<i32>} : memref<1x1x1xf32, #tpu.memory_space<vmem>>, vector<1x1x1xf32>,
    return
  }
  func.func @transform_0(%arg0: i32, %arg1: i32) -> (i32, i32) {
    %c1_i32 = arith.constant 1 : i32
    %0 = arith.muli %arg0, %c1_i32 : i32
    %1 = arith.addi %0, %arg1 : i32
    %c0_i32 = arith.constant 0 : i32
    %c0_i32_0 = arith.constant 0 : i32
    return %1, %c0_i32 : i32, i32
  }
  func.func @transform_1(%arg0: i32, %arg1: i32) -> (i32, i32) {
    %c1_i32 = arith.constant 1 : i32
    %0 = arith.muli %arg0, %c1_i32 : i32
    %1 = arith.addi %0, %arg1 : i32
    %c0_i32 = arith.constant 0 : i32
    %c0_i32_0 = arith.constant 0 : i32
    return %1, %c0_i32 : i32, i32
  }
  func.func @transform_2(%arg0: i32, %arg1: i32) -> (i32, i32, i32) {
    %c0_i32 = arith.constant 0 : i32
    %c0_i32_0 = arith.constant 0 : i32
    %c0_i32_1 = arith.constant 0 : i32
    return %arg0, %c0_i32, %c0_i32_0 : i32, i32, i32
  }
}

</mosaic_0001>

<llo_original>
// kernel: tpu_custom_call.1
$region0: #{tpu_custom_call.1}
  #allocation0 [shape = 'u32[]', space=smem, size = 0x4, offset = 0x4, fixed_abs, tag = 'smem constant byte address 0x4 - core index']
  #allocation1 [shape = 'u32[72,128]{1,0:T(1,128)}', space=vmem, size = 0x9000, scoped, tag = 'internal scratch']
  %s0 = inlined_call_operand.vmem [shape: f32[8,16], index: 0, kind: input, shape index: {}]
  %s1 = inlined_call_operand.vmem [shape: s32[8,1], index: 1, kind: input, shape index: {}]
  %s2 = inlined_call_operand.hbm [shape: f32[1,1,1], index: 2, kind: output, shape index: {}]
  %s3 = sld [smem:[#allocation0]]
  $region22: #{tpu_custom_call.1} parent=0
    _
  %s5 = ssub.s32 1, %s3
  %s6 = scalar_select 0, %s5, %s3
  $region1: #{tpu_custom_call.1} parent=0
    #allocation2 [shape = 'u8[512]{0}', space=vmem, size = 0x400, scoped, tag = 'output window, operand 0, single buffered']
    #allocation3 [shape = 's32[1]{0}', space=sflag, size = 0x4, scoped, tag = 'scoped memory for tpu_custom_call.1']
    %7 = vsyncpa [#allocation3], 0
    // Predicated region
    $region2: #{tpu_custom_call.1} parent=1 // pred_check
      _
    $region3: #{tpu_custom_call.1} parent=1 // pred_check_branch
      %9 = sbr.rel (0) target = $region5
    $region4: #{tpu_custom_call.1} parent=1 // pred_region
      %s10 = sadd.s32 0, 0
      %p11 = scmp.lt.s32.totalorder %s10, 0
      %s12 = scalar_select %p11, %s10, 0
      %s13 = smul.addr %s12, 8
      %s14 = scalar_lea.vmem %s0, %s13
      %s15 = sadd.s32 0, 0
    $region5: #{tpu_custom_call.1} parent=1 // pred_fallthru
      _
    // Predicated region
    $region6: #{tpu_custom_call.1} parent=1 // pred_check
      _
    $region7: #{tpu_custom_call.1} parent=1 // pred_check_branch
      %17 = sbr.rel (0) target = $region9
    $region8: #{tpu_custom_call.1} parent=1 // pred_region
      %s18 = sadd.s32 0, 0
      %p19 = scmp.lt.s32.totalorder %s18, 0
      %s20 = scalar_select %p19, %s18, 0
      %s21 = smul.addr %s20, 8
      %s22 = scalar_lea.vmem %s1, %s21
      %s23 = sadd.s32 0, 0
    $region9: #{tpu_custom_call.1} parent=1 // pred_fallthru
      _
    %s24 = sadd.s32 0, 0
    %p25 = scmp.lt.s32.totalorder %s24, 0
    %s26 = scalar_select %p25, %s24, 0
    %s27 = smul.addr %s26, 8
    %s28 = scalar_lea.vmem %s0, %s27
    %s29 = sadd.s32 0, 0
    %p30 = scmp.lt.s32.totalorder %s29, 0
    %s31 = scalar_select %p30, %s29, 0
    %s32 = smul.addr %s31, 8
    %s33 = scalar_lea.vmem %s1, %s32
    %s34 = sadd.s32 0, 0
    %p35 = scmp.lt.s32.totalorder %s34, 0
    %s36 = scalar_select %p35, %s34, 0
    %s37 = smul.addr %s36, 8
    %s38 = scalar_lea.vmem %s0, %s37
    %s39 = sadd.s32 0, 0
    %s40 = sadd.s32 0, 0
    %p41 = scmp.lt.s32.totalorder %s40, 0
    %s42 = scalar_select %p41, %s40, 0
    %s43 = smul.addr %s42, 8
    %s44 = scalar_lea.vmem %s1, %s43
    %s45 = sadd.s32 0, 0
    %p46 = scmp.eq.s32.totalorder 0, 0
    // Predicated region
    $region10: #{tpu_custom_call.1} parent=1 // pred_check
      %p47 = pneg %p46
    $region11: #{tpu_custom_call.1} parent=1 // pred_check_branch
      %49 = sbr.rel (%p47) target = $region13
    $region12: #{tpu_custom_call.1} parent=1 // pred_region
      %vm50 = vcmask 0
      %51 = vst.msk [vmem:[#allocation2] sm:$0x1] %vm50, 0.0
    $region13: #{tpu_custom_call.1} parent=1 // pred_fallthru
      _
    %v52 = vld [vmem:[%s38] sm:$0xff]
    %v53 = vld [vmem:[%s44] sm:$0xff]
    %vm54 = vcmask 130048
    %v55 = vsel %vm54, %v52, -inf
    %56 = vmax.xlane.f32.xlu0 %v55
    %v57 = vpop.xlane.xlu0 %56
    %v58 = vsub.f32 %v52, %v57
    %v59 = vmul.f32 %v58, 1.442695
    %v60 = vpow.pop %v59
    %v61 = vsel %vm54, %v60, 0.0
    %62 = vadd.xlane.f32.xlu0 %v61
    %v63 = vpop.xlane.xlu0 %62
    %v64 = vlog2.pop %v63
    %v65 = vmul.f32 %v64, 0.6931472
    %v66 = vlaneseq
    %v67 = vand.u32 %v66, 127
    %68 = vset.pattern.permute.xlu0 0
    %69 = vperm.xlu0 %68, %v53
    %v70 = vpop.permute.xlu0 %69
    %vm71 = vcmp.eq.s32.totalorder %v67, %v70
    %v72 = vsel %vm71, %v58, 0.0
    %v73 = vsel %vm54, %v72, 0.0
    %74 = vadd.xlane.f32.xlu0 %v73
    %v75 = vpop.xlane.xlu0 %74
    %v76 = vsub.f32 %v65, %v75
    %s77 = sadd.s32 0, 0
    %s78 = smul.u32 %s77, 8
    %v79 = vlaneseq
    %v80 = vshrl.u32 %v79, 7
    %v81 = vstv %s78
    %v82 = vadd.s32 %v81, %v80
    %vm83 = vcmp.lt.s32.totalorder %v82, 8
    %v84 = vsel %vm83, %v76, 0.0
    %v85 = vld [vmem:[#allocation2] sm:$0x1]
    %v86 = vrot.slane %v84, 4
    %v87 = vadd.f32 %v84, %v86
    %v88 = vrot.slane %v87, 2
    %v89 = vadd.f32 %v87, %v88
    %v90 = vrot.slane %v89, 1
    %v91 = vadd.f32 %v89, %v90
    %v92 = vadd.f32 %v85, %v91
    %vm93 = vcmask 0
    %94 = vst.msk [vmem:[#allocation2] sm:$0x1] %vm93, %v92
    // Predicated region
    $region14: #{tpu_custom_call.1} parent=1 // pred_check
      _
    $region15: #{tpu_custom_call.1} parent=1 // pred_check_branch
      %96 = sbr.rel (0) target = $region17
    $region16: #{tpu_custom_call.1} parent=1 // pred_region
      %98 = vsyncadd [#allocation3], 0
      %s100 = sshll.u32 [#allocation2], 4
      %s101 = int_to_ptr.vmem [resolvable:$true] %s100
      %s102 = sshll.u32 %s2, 4
      %s103 = int_to_ptr.hbm [resolvable:$true] %s102
      %105 = dma.vmem_to_hbm [thread:$0]  %s101, 16, %s103, [#allocation3]
    $region17: #{tpu_custom_call.1} parent=1 // pred_fallthru
      _
    // Predicated region
    $region18: #{tpu_custom_call.1} parent=1 // pred_check
      _
    $region19: #{tpu_custom_call.1} parent=1 // pred_check_branch
      %107 = sbr.rel (0) target = $region21
    $region20: #{tpu_custom_call.1} parent=1 // pred_region
      %109 = dma.done [#allocation3], 16
    $region21: #{tpu_custom_call.1} parent=1 // pred_fallthru
      _
    %110 = vsyncpa [#allocation3], 1

</llo_original>
